<compile_context>
chip_gen: v5e
topology: v5e:2x2
jax: 0.10.0
libtpu: 0.0.40
codegen_flags: <defaults>
</compile_context>

<pallas_src>
import functools

import jax
import jax.numpy as jnp
from jax import lax
from jax.experimental import pallas as pl
from jax.experimental.pallas import tpu as pltpu

_LANE = 128
_SUB = 8


def _round_up(n, m):
    return ((n + m - 1) // m) * m


def qnetwork_kernel(x_ref, w1_ref, b1_ref, w2_ref, b2_ref, w3t_ref, b3t_ref, o_ref):
    # fc1 + relu: (TM, S) @ (S, H) -> (TM, H); MXU with f32 accumulation, bias/ReLU in f32.
    h1 = jnp.dot(x_ref[...], w1_ref[...], preferred_element_type=jnp.float32)
    h1 = jnp.maximum(h1 + b1_ref[...], 0.0)
    # fc2 + relu: (TM, H) @ (H, H) -> (TM, H).
    h2 = jnp.dot(h1.astype(w2_ref.dtype), w2_ref[...],
                 preferred_element_type=jnp.float32)
    h2 = jnp.maximum(h2 + b2_ref[...], 0.0)
    # fc3, computed directly in transposed layout (A_sub, TM):
    #   out_t[a, m] = sum_k w3[k, a] * h2[m, k]
    # i.e. lhs (A_sub, H) contracted with rhs (TM, H) on their last dims (q @ k^T pattern).
    out_t = lax.dot_general(
        w3t_ref[...], h2.astype(w3t_ref.dtype),
        dimension_numbers=(((1,), (1,)), ((), ())),
        preferred_element_type=jnp.float32)
    # Lane-dense (A_sub, TM) store; bias broadcast along lanes.
    o_ref[...] = (out_t + b3t_ref[...]).astype(o_ref.dtype)


@functools.partial(jax.jit, static_argnames=("tm", "compute_dtype"))
def qnetwork_forward(x, params, *, tm=2048, compute_dtype=jnp.bfloat16):
    """x: (B, state_size) float32; params: dict of w1,b1,w2,b2,w3,b3. Returns (B, action)."""
    w1, b1 = params["w1"], params["b1"]
    w2, b2 = params["w2"], params["b2"]
    w3, b3 = params["w3"], params["b3"]

    B, S = x.shape
    H = w1.shape[1]
    A = w3.shape[1]
    A_sub = max(_SUB, _round_up(A, _SUB))          # sublane-rounded action count

    # --- transposed fc3 weights/bias (zero rows beyond A -> exact math, sliced off later) ---
    w3t = jnp.zeros((A_sub, H), w3.dtype).at[:A, :].set(w3.T)
    b3t = jnp.zeros((A_sub, 1), jnp.float32).at[:A, 0].set(b3.reshape(-1).astype(jnp.float32))

    # --- operand dtypes: bf16 (default) hits the native MXU datapath on v6e/v7x;
    #     accumulation, biases and ReLU stay f32 inside the kernel. ---
    xc = x.astype(compute_dtype)
    w1c, w2c, w3tc = (w.astype(compute_dtype) for w in (w1, w2, w3t))
    b1f, b2f = (b.astype(jnp.float32) for b in (b1, b2))

    # --- batch handling: pad only to a multiple of 8 rows (cheap), uneven last tile allowed ---
    B8 = _round_up(B, _SUB)
    if B8 != B:
        xc = jnp.pad(xc, ((0, B8 - B), (0, 0)))

    tm = max(256, _round_up(tm, 256))              # keep TM a multiple of 256 when it matters
    TM = min(tm, B8)
    # v7x: keep the batch grid >= 2 so "parallel" can shard across both TensorCores.
    if TM >= B8 and B8 >= 1024:
        TM = _round_up(pl.cdiv(B8, 2), 256)
    grid = (pl.cdiv(B8, TM),)

    # --- VMEM budget from actual per-tile footprint (x lane-pads to 128 lanes per row) ---
    itemsize = jnp.dtype(compute_dtype).itemsize
    tile_bytes = (
        2 * TM * _LANE * itemsize          # x tile, double-buffered, lane-padded
        + 2 * TM * H * 4                   # h1 / h2 f32 temporaries
        + 2 * TM * H * itemsize            # bf16 casts of h1 / h2
        + 3 * A_sub * TM * 4               # out tile double-buffer + matmul temp
        + (S * H + H * H + A_sub * H) * itemsize
        + (2 * H + A_sub) * 4
    )
    vmem_limit = min(64 << 20, max(32 << 20, int(tile_bytes * 3 // 2) + (2 << 20)))

    cost = pl.CostEstimate(
        flops=2 * B8 * (S * H + H * H + H * A_sub),
        transcendentals=0,
        bytes_accessed=(B8 * S * itemsize
                        + (S * H + H * H + A_sub * H) * itemsize
                        + (2 * H + A_sub) * 4
                        + A_sub * B8 * 4),
    )

    out_t = pl.pallas_call(
        qnetwork_kernel,
        out_shape=jax.ShapeDtypeStruct((A_sub, B8), jnp.float32),
        grid=grid,
        in_specs=[
            pl.BlockSpec((TM, S), lambda i: (i, 0)),        # x tile, pipelined over batch
            pl.BlockSpec((S, H), lambda i: (0, 0)),         # w1 resident
            pl.BlockSpec((1, H), lambda i: (0, 0)),         # b1 resident
            pl.BlockSpec((H, H), lambda i: (0, 0)),         # w2 resident
            pl.BlockSpec((1, H), lambda i: (0, 0)),         # b2 resident
            pl.BlockSpec((A_sub, H), lambda i: (0, 0)),     # w3^T resident
            pl.BlockSpec((A_sub, 1), lambda i: (0, 0)),     # b3^T resident
        ],
        out_specs=pl.BlockSpec((A_sub, TM), lambda i: (0, i)),   # transposed, lane-dense
        compiler_params=pltpu.CompilerParams(
            dimension_semantics=("parallel",),
            vmem_limit_bytes=vmem_limit),
        cost_estimate=cost,
    )(xc, w1c, b1f, w2c, b2f, w3tc, b3t)

    # (A_sub, B8) -> (B, A): tiny wrapper-side transpose, negligible vs. kernel traffic.
    return out_t[:A, :B].T


def init_params(key, state_size, action_size, hidden=128):
    """Deterministic init mimicking nn.Linear default (uniform(+-1/sqrt(fan_in)))."""
    ks = jax.random.split(key, 6)

    def linear(kw, kb, fan_in, fan_out):
        bound = 1.0 / jnp.sqrt(jnp.float32(fan_in))
        w = jax.random.uniform(kw, (fan_in, fan_out), jnp.float32, -bound, bound)
        b = jax.random.uniform(kb, (1, fan_out), jnp.float32, -bound, bound)
        return w, b

    w1, b1 = linear(ks[0], ks[1], state_size, hidden)
    w2, b2 = linear(ks[2], ks[3], hidden, hidden)
    w3, b3 = linear(ks[4], ks[5], hidden, action_size)
    return {"w1": w1, "b1": b1, "w2": w2, "b2": b2, "w3": w3, "b3": b3}


def reference_forward(x, p):
    h1 = jnp.maximum(x @ p["w1"] + p["b1"], 0.0)
    h2 = jnp.maximum(h1 @ p["w2"] + p["b2"], 0.0)
    return h2 @ p["w3"] + p["b3"]


if __name__ == "__main__":
    key = jax.random.PRNGKey(0)
    k_x, k_p, k_x2 = jax.random.split(key, 3)

    batch = 2
    state_size = 8
    action_size = 4

    x = jax.random.normal(k_x, (batch, state_size), jnp.float32)
    params = init_params(k_p, state_size, action_size)
    ref = reference_forward(x, params)

    # f32-operand path: tight tolerance.
    out = jax.block_until_ready(qnetwork_forward(x, params, compute_dtype=jnp.float32))
    assert out.shape == (batch, action_size), out.shape
    assert jnp.allclose(out, ref, atol=1e-5, rtol=1e-5), (out, ref)

    # Default bf16-operand path (f32 accumulation): loose tolerance.
    out_bf = jax.block_until_ready(qnetwork_forward(x, params))
    assert out_bf.shape == (batch, action_size), out_bf.shape
    assert jnp.allclose(out_bf, ref, atol=5e-2, rtol=5e-2), (out_bf, ref)

    # Larger, non-tile-multiple batch: exercises row padding + uneven last tile (grid=2).
    xb = jax.random.normal(k_x2, (1000, state_size), jnp.float32)
    refb = reference_forward(xb, params)
    outb = jax.block_until_ready(
        qnetwork_forward(xb, params, tm=512, compute_dtype=jnp.float32))
    assert outb.shape == (1000, action_size), outb.shape
    assert jnp.allclose(outb, refb, atol=1e-4, rtol=1e-4)

    print("KERNEL_OK")
</pallas_src>

<mosaic_0001>
module attributes {stable_mosaic.version = 11 : i64} {
  func.func @qnetwork_kernel(%arg0: i32, %arg1: memref<8x8xf32, #tpu.memory_space<vmem>>, %arg2: memref<8x128xf32, #tpu.memory_space<vmem>>, %arg3: memref<1x128xf32, #tpu.memory_space<vmem>>, %arg4: memref<128x128xf32, #tpu.memory_space<vmem>>, %arg5: memref<1x128xf32, #tpu.memory_space<vmem>>, %arg6: memref<8x128xf32, #tpu.memory_space<vmem>>, %arg7: memref<8x1xf32, #tpu.memory_space<vmem>>, %arg8: memref<8x8xf32, #tpu.memory_space<vmem>>) attributes {dimension_semantics = [#tpu.dimension_semantics<parallel>], iteration_bounds = array<i64: 1>, scalar_prefetch = 0 : i64, scratch_operands = 0 : i64, tpu.core_type = #tpu.core_type<tc>, window_params = [{transform_indices = @transform_0, window_bounds = array<i64: 8, 8>}, {pipeline_mode = #tpu.pipeline_mode<synchronous>, transform_indices = @transform_1, window_bounds = array<i64: 8, 128>}, {pipeline_mode = #tpu.pipeline_mode<synchronous>, transform_indices = @transform_2, window_bounds = array<i64: 1, 128>}, {pipeline_mode = #tpu.pipeline_mode<synchronous>, transform_indices = @transform_3, window_bounds = array<i64: 128, 128>}, {pipeline_mode = #tpu.pipeline_mode<synchronous>, transform_indices = @transform_4, window_bounds = array<i64: 1, 128>}, {pipeline_mode = #tpu.pipeline_mode<synchronous>, transform_indices = @transform_5, window_bounds = array<i64: 8, 128>}, {pipeline_mode = #tpu.pipeline_mode<synchronous>, transform_indices = @transform_6, window_bounds = array<i64: 8, 1>}, {transform_indices = @transform_7, window_bounds = array<i64: 8, 8>}]} {
    %c0 = arith.constant 0 : index
    %c0_0 = arith.constant 0 : index
    %0 = vector.load %arg1[%c0, %c0_0] : memref<8x8xf32, #tpu.memory_space<vmem>>, vector<8x8xf32>
    %c0_1 = arith.constant 0 : index
    %c0_2 = arith.constant 0 : index
    %1 = vector.load %arg2[%c0_1, %c0_2] : memref<8x128xf32, #tpu.memory_space<vmem>>, vector<8x128xf32>
    %cst = arith.constant dense<0.000000e+00> : vector<8x128xf32>
    %2 = tpu.matmul %0, %1, %cst {dimension_numbers = #tpu.dot_dimension_numbers<[1], [0], [0], [1], [0, 0, 1, 1], [], []>} : vector<8x8xf32>, vector<8x128xf32>, vector<8x128xf32> -> vector<8x128xf32>
    %c0_3 = arith.constant 0 : index
    %c0_4 = arith.constant 0 : index
    %3 = vector.load %arg3[%c0_3, %c0_4] : memref<1x128xf32, #tpu.memory_space<vmem>>, vector<1x128xf32>
    %4 = vector.broadcast %3 : vector<1x128xf32> to vector<8x128xf32>
    %5 = arith.addf %2, %4 : vector<8x128xf32>
    %cst_5 = arith.constant 0.000000e+00 : f32
    %6 = vector.broadcast %cst_5 : f32 to vector<8x128xf32>
    %7 = arith.maximumf %5, %6 : vector<8x128xf32>
    %c0_6 = arith.constant 0 : index
    %c0_7 = arith.constant 0 : index
    %8 = vector.load %arg4[%c0_6, %c0_7] : memref<128x128xf32, #tpu.memory_space<vmem>>, vector<128x128xf32>
    %cst_8 = arith.constant dense<0.000000e+00> : vector<8x128xf32>
    %9 = tpu.matmul %7, %8, %cst_8 {dimension_numbers = #tpu.dot_dimension_numbers<[1], [0], [0], [1], [0, 0, 1, 1], [], []>} : vector<8x128xf32>, vector<128x128xf32>, vector<8x128xf32> -> vector<8x128xf32>
    %c0_9 = arith.constant 0 : index
    %c0_10 = arith.constant 0 : index
    %10 = vector.load %arg5[%c0_9, %c0_10] : memref<1x128xf32, #tpu.memory_space<vmem>>, vector<1x128xf32>
    %11 = vector.broadcast %10 : vector<1x128xf32> to vector<8x128xf32>
    %12 = arith.addf %9, %11 : vector<8x128xf32>
    %cst_11 = arith.constant 0.000000e+00 : f32
    %13 = vector.broadcast %cst_11 : f32 to vector<8x128xf32>
    %14 = arith.maximumf %12, %13 : vector<8x128xf32>
    %c0_12 = arith.constant 0 : index
    %c0_13 = arith.constant 0 : index
    %15 = vector.load %arg6[%c0_12, %c0_13] : memref<8x128xf32, #tpu.memory_space<vmem>>, vector<8x128xf32>
    %cst_14 = arith.constant dense<0.000000e+00> : vector<8x8xf32>
    %16 = tpu.matmul %15, %14, %cst_14 {dimension_numbers = #tpu.dot_dimension_numbers<[1], [1], [0], [0], [0, 0, 1, 0], [], []>} : vector<8x128xf32>, vector<8x128xf32>, vector<8x8xf32> -> vector<8x8xf32>
    %c0_15 = arith.constant 0 : index
    %c0_16 = arith.constant 0 : index
    %17 = vector.load %arg7[%c0_15, %c0_16] : memref<8x1xf32, #tpu.memory_space<vmem>>, vector<8x1xf32>
    %18 = vector.broadcast %17 : vector<8x1xf32> to vector<8x8xf32>
    %19 = arith.addf %16, %18 : vector<8x8xf32>
    %c0_17 = arith.constant 0 : index
    %c0_18 = arith.constant 0 : index
    %20 = vector.load %arg8[%c0_17, %c0_18] : memref<8x8xf32, #tpu.memory_space<vmem>>, vector<8x8xf32>
    tpu.vector_store %arg8[%c0_17, %c0_18], %19 {strides = array<i32>} : memref<8x8xf32, #tpu.memory_space<vmem>>, vector<8x8xf32>,
    return
  }
  func.func @transform_0(%arg0: i32) -> (i32, i32) {
    %c0_i32 = arith.constant 0 : i32
    %c0_i32_0 = arith.constant 0 : i32
    return %arg0, %c0_i32 : i32, i32
  }
  func.func @transform_1(%arg0: i32) -> (i32, i32) {
    %c0_i32 = arith.constant 0 : i32
    %c0_i32_0 = arith.constant 0 : i32
    %c0_i32_1 = arith.constant 0 : i32
    return %c0_i32, %c0_i32_0 : i32, i32
  }
  func.func @transform_2(%arg0: i32) -> (i32, i32) {
    %c0_i32 = arith.constant 0 : i32
    %c0_i32_0 = arith.constant 0 : i32
    %c0_i32_1 = arith.constant 0 : i32
    return %c0_i32, %c0_i32_0 : i32, i32
  }
  func.func @transform_3(%arg0: i32) -> (i32, i32) {
    %c0_i32 = arith.constant 0 : i32
    %c0_i32_0 = arith.constant 0 : i32
    %c0_i32_1 = arith.constant 0 : i32
    return %c0_i32, %c0_i32_0 : i32, i32
  }
  func.func @transform_4(%arg0: i32) -> (i32, i32) {
    %c0_i32 = arith.constant 0 : i32
    %c0_i32_0 = arith.constant 0 : i32
    %c0_i32_1 = arith.constant 0 : i32
    return %c0_i32, %c0_i32_0 : i32, i32
  }
  func.func @transform_5(%arg0: i32) -> (i32, i32) {
    %c0_i32 = arith.constant 0 : i32
    %c0_i32_0 = arith.constant 0 : i32
    %c0_i32_1 = arith.constant 0 : i32
    return %c0_i32, %c0_i32_0 : i32, i32
  }
  func.func @transform_6(%arg0: i32) -> (i32, i32) {
    %c0_i32 = arith.constant 0 : i32
    %c0_i32_0 = arith.constant 0 : i32
    %c0_i32_1 = arith.constant 0 : i32
    return %c0_i32, %c0_i32_0 : i32, i32
  }
  func.func @transform_7(%arg0: i32) -> (i32, i32) {
    %c0_i32 = arith.constant 0 : i32
    %c0_i32_0 = arith.constant 0 : i32
    return %c0_i32, %arg0 : i32, i32
  }
}

</mosaic_0001>

<llo_original>
// kernel: qnetwork_forward.1
$region0: #{qnetwork_forward.1}
  #allocation0 [shape = 'u32[]', space=smem, size = 0x4, offset = 0x4, fixed_abs, tag = 'smem constant byte address 0x4 - core index']
  #allocation1 [shape = 'u32[72,128]{1,0:T(1,128)}', space=vmem, size = 0x9000, scoped, tag = 'internal scratch']
  %s0 = inlined_call_operand.vmem [shape: f32[8,8], index: 0, kind: input, shape index: {}]
  %s1 = inlined_call_operand.vmem [shape: f32[8,128], index: 1, kind: input, shape index: {}]
  %s2 = inlined_call_operand.vmem [shape: f32[1,128], index: 2, kind: input, shape index: {}]
  %s3 = inlined_call_operand.hbm [shape: f32[128,128], index: 3, kind: input, shape index: {}]
  %s4 = inlined_call_operand.vmem [shape: f32[1,128], index: 4, kind: input, shape index: {}]
  %s5 = inlined_call_operand.vmem [shape: f32[8,128], index: 5, kind: input, shape index: {}]
  %s6 = inlined_call_operand.vmem [shape: f32[8,1], index: 6, kind: input, shape index: {}]
  %s7 = inlined_call_operand.vmem [shape: f32[8,8], index: 7, kind: output, shape index: {}]
  %s8 = sld [smem:[#allocation0]]
  $region42: #{qnetwork_forward.1} parent=0
    _
  %s10 = ssub.s32 1, %s8
  %s11 = scalar_select 0, %s10, %s8
  $region1: #{qnetwork_forward.1} parent=0
    #allocation2 [shape = 'u8[65536]{0}', space=vmem, size = 0x10000, scoped, tag = 'input window, operand 3, single buffered']
    #allocation3 [shape = 's32[1]{0}', space=sflag, size = 0x4, scoped, tag = 'scoped memory for qnetwork_forward.1']
    %12 = vsyncpa [#allocation3], 0
    // Predicated region
    $region2: #{qnetwork_forward.1} parent=1 // pred_check
      _
    $region3: #{qnetwork_forward.1} parent=1 // pred_check_branch
      %14 = sbr.rel (0) target = $region5
    $region4: #{qnetwork_forward.1} parent=1 // pred_region
      _
    $region5: #{qnetwork_forward.1} parent=1 // pred_fallthru
      _
    // Predicated region
    $region6: #{qnetwork_forward.1} parent=1 // pred_check
      _
    $region7: #{qnetwork_forward.1} parent=1 // pred_check_branch
      %16 = sbr.rel (0) target = $region9
    $region8: #{qnetwork_forward.1} parent=1 // pred_region
      _
    $region9: #{qnetwork_forward.1} parent=1 // pred_fallthru
      _
    // Predicated region
    $region10: #{qnetwork_forward.1} parent=1 // pred_check
      _
    $region11: #{qnetwork_forward.1} parent=1 // pred_check_branch
      %18 = sbr.rel (0) target = $region13
    $region12: #{qnetwork_forward.1} parent=1 // pred_region
      _
    $region13: #{qnetwork_forward.1} parent=1 // pred_fallthru
      _
    // Predicated region
    $region14: #{qnetwork_forward.1} parent=1 // pred_check
      _
    $region15: #{qnetwork_forward.1} parent=1 // pred_check_branch
      %20 = sbr.rel (0) target = $region17
    $region16: #{qnetwork_forward.1} parent=1 // pred_region
      %22 = vsyncadd [#allocation3], 0
      %s23 = sshll.u32 %s3, 4
      %s24 = int_to_ptr.hbm [resolvable:$true] %s23
      %s25 = sshll.u32 [#allocation2], 4
      %s26 = int_to_ptr.vmem [resolvable:$true] %s25
      %31 = dma.hbm_to_vmem [thread:$0]  %s24, 2048, %s26, [#allocation3], 128, 128, 8
    $region17: #{qnetwork_forward.1} parent=1 // pred_fallthru
      _
    // Predicated region
    $region18: #{qnetwork_forward.1} parent=1 // pred_check
      _
    $region19: #{qnetwork_forward.1} parent=1 // pred_check_branch
      %33 = sbr.rel (0) target = $region21
    $region20: #{qnetwork_forward.1} parent=1 // pred_region
      _
    $region21: #{qnetwork_forward.1} parent=1 // pred_fallthru
      _
    // Predicated region
    $region22: #{qnetwork_forward.1} parent=1 // pred_check
      _
    $region23: #{qnetwork_forward.1} parent=1 // pred_check_branch
      %35 = sbr.rel (0) target = $region25
    $region24: #{qnetwork_forward.1} parent=1 // pred_region
      _
    $region25: #{qnetwork_forward.1} parent=1 // pred_fallthru
      _
    // Predicated region
    $region26: #{qnetwork_forward.1} parent=1 // pred_check
      _
    $region27: #{qnetwork_forward.1} parent=1 // pred_check_branch
      %37 = sbr.rel (0) target = $region29
    $region28: #{qnetwork_forward.1} parent=1 // pred_region
      _
    $region29: #{qnetwork_forward.1} parent=1 // pred_fallthru
      _
    // Predicated region
    $region30: #{qnetwork_forward.1} parent=1 // pred_check
      _
    $region31: #{qnetwork_forward.1} parent=1 // pred_check_branch
      %39 = sbr.rel (0) target = $region33
    $region32: #{qnetwork_forward.1} parent=1 // pred_region
      %41 = dma.done [#allocation3], 2048
    $region33: #{qnetwork_forward.1} parent=1 // pred_fallthru
      _
    %v42 = vld [vmem:[%s0] sm:$0xff]
    %v43 = vld [vmem:[%s1] sm:$0xff]
    %v44 = vld [vmem:[%s2] sm:$0x1]
    %v46 = vperm.slane %v44, 0
    %vm48 = vcmask 64512
    %v50 = vsel %vm48, %v42, 0
    %52 = vmatpush.msra.mxu0 0.0
    %53 = vmatpush.msra.mxu0 0.0
    %54 = vmatpush.msra.mxu0 0.0
    %55 = vmatpush.msra.mxu0 0.0
    %56 = vmatpush.msra.mxu0 0.0
    %57 = vmatpush.msra.mxu0 0.0
    %58 = vmatpush.msra.mxu0 0.0
    %59 = vmatpush.msra.mxu0 0.0
    %60 = vmatpush.msra.mxu0 0.0
    %61 = vmatpush.msra.mxu0 0.0
    %62 = vmatpush.msra.mxu0 0.0
    %63 = vmatpush.msra.mxu0 0.0
    %64 = vmatpush.msra.mxu0 0.0
    %65 = vmatpush.msra.mxu0 0.0
    %66 = vmatpush.msra.mxu0 0.0
    %67 = vmatpush.msra.mxu0 %v43
    %68 = vmatmul.f32.gmra.mxu0 %v50
    %v69 = vpop.f32.mrf.mxu0
    %v70 = vadd.f32 %v46, %v69
    %71 = vdwg.mxu0
    %v72 = vmax.f32 %v70, 0.0
    %v73 = vld [vmem:[#allocation2] sm:$0xff]
    %v74 = vld [vmem:[#allocation2 + $0x8] sm:$0xff]
    %v75 = vld [vmem:[#allocation2 + $0x10] sm:$0xff]
    %v76 = vld [vmem:[#allocation2 + $0x18] sm:$0xff]
    %v77 = vld [vmem:[#allocation2 + $0x20] sm:$0xff]
    %v78 = vld [vmem:[#allocation2 + $0x28] sm:$0xff]
    %v79 = vld [vmem:[#allocation2 + $0x30] sm:$0xff]
    %v80 = vld [vmem:[#allocation2 + $0x38] sm:$0xff]
    %v81 = vld [vmem:[#allocation2 + $0x40] sm:$0xff]
    %v82 = vld [vmem:[#allocation2 + $0x48] sm:$0xff]
    %v83 = vld [vmem:[#allocation2 + $0x50] sm:$0xff]
    %v84 = vld [vmem:[#allocation2 + $0x58] sm:$0xff]
    %v85 = vld [vmem:[#allocation2 + $0x60] sm:$0xff]
    %v86 = vld [vmem:[#allocation2 + $0x68] sm:$0xff]
    %v87 = vld [vmem:[#allocation2 + $0x70] sm:$0xff]
    %v88 = vld [vmem:[#allocation2 + $0x78] sm:$0xff]
    %v89 = vld [vmem:[%s4] sm:$0x1]
    %v91 = vperm.slane %v89, 0
    %93 = vmatpush.msra.mxu0 %v88
    %94 = vmatpush.msra.mxu0 %v87
    %95 = vmatpush.msra.mxu0 %v86
    %96 = vmatpush.msra.mxu0 %v85
    %97 = vmatpush.msra.mxu0 %v84
    %98 = vmatpush.msra.mxu0 %v83
    %99 = vmatpush.msra.mxu0 %v82
    %100 = vmatpush.msra.mxu0 %v81
    %101 = vmatpush.msra.mxu0 %v80
    %102 = vmatpush.msra.mxu0 %v79
    %103 = vmatpush.msra.mxu0 %v78
    %104 = vmatpush.msra.mxu0 %v77
    %105 = vmatpush.msra.mxu0 %v76
    %106 = vmatpush.msra.mxu0 %v75
    %107 = vmatpush.msra.mxu0 %v74
    %108 = vmatpush.msra.mxu0 %v73
    %109 = vmatmul.f32.gmra.mxu0 %v72
    %v110 = vpop.f32.mrf.mxu0
    %v111 = vadd.f32 %v91, %v110
    %112 = vdwg.mxu0
    %v113 = vmax.f32 %v111, 0.0
    %v114 = vld [vmem:[%s5] sm:$0xff]
    %v115 = vld [vmem:[%s6] sm:$0xff]
    %117 = vset.pattern.permute.xlu0 0
    %118 = vperm.xlu0 %117, %v115
    %v119 = vpop.permute.xlu0 %118
    %121 = vmatpush.xpose.msra.mxu0 0.0
    %122 = vmatpush.xpose.msra.mxu0 0.0
    %123 = vmatpush.xpose.msra.mxu0 0.0
    %124 = vmatpush.xpose.msra.mxu0 0.0
    %125 = vmatpush.xpose.msra.mxu0 0.0
    %126 = vmatpush.xpose.msra.mxu0 0.0
    %127 = vmatpush.xpose.msra.mxu0 0.0
    %128 = vmatpush.xpose.msra.mxu0 0.0
    %129 = vmatpush.xpose.msra.mxu0 0.0
    %130 = vmatpush.xpose.msra.mxu0 0.0
    %131 = vmatpush.xpose.msra.mxu0 0.0
    %132 = vmatpush.xpose.msra.mxu0 0.0
    %133 = vmatpush.xpose.msra.mxu0 0.0
    %134 = vmatpush.xpose.msra.mxu0 0.0
    %135 = vmatpush.xpose.msra.mxu0 0.0
    %136 = vmatpush.xpose.msra.mxu0 %v113
    %137 = vmatmul.f32.gmra.mxu0 %v114
    %v138 = vpop.f32.mrf.mxu0
    %v139 = vadd.f32 %v119, %v138
    %140 = vdwg.mxu0
    %141 = vst.msk [vmem:[%s7] sm:$0xff] %vm48, %v139
    // Predicated region
    $region34: #{qnetwork_forward.1} parent=1 // pred_check
      _
    $region35: #{qnetwork_forward.1} parent=1 // pred_check_branch
      %143 = sbr.rel (0) target = $region37
    $region36: #{qnetwork_forward.1} parent=1 // pred_region
      _
    $region37: #{qnetwork_forward.1} parent=1 // pred_fallthru
      _
    // Predicated region
    $region38: #{qnetwork_forward.1} parent=1 // pred_check
      _
    $region39: #{qnetwork_forward.1} parent=1 // pred_check_branch
      %145 = sbr.rel (0) target = $region41
    $region40: #{qnetwork_forward.1} parent=1 // pred_region
      _
    $region41: #{qnetwork_forward.1} parent=1 // pred_fallthru
      _
    %146 = vsyncpa [#allocation3], 1

</llo_original>
